<compile_context>
chip_gen: v7x
topology: tpu7x:2x2x1
jax: 0.10.0
libtpu: 0.0.40
codegen_flags: <defaults>
</compile_context>

<pallas_src>
import numpy as np
import jax
import jax.numpy as jnp
from jax.experimental import pallas as pl
from jax.experimental.pallas import tpu as pltpu

H, W = 5, 5                      # input spatial size implied by Linear(18, ...)
KH, KW = 3, 3
C_OUT = 2
OH, OW = H - KH + 1, W - KW + 1  # 3, 3
FLAT = C_OUT * OH * OW           # 18
IN_FEAT = H * W                  # 25
H1, H2, H3 = 64, 128, 25
LANE = 128                       # lane-dense hidden width
XPAD = 32                        # rows reserved for the conv weight (keeps later slices 8-aligned)
WROWS = XPAD + 3 * LANE          # 416 packed weight rows


def _round_up(a, b):
    return (a + b - 1) // b * b


def _build_sel():
    """Static binary tensor S[k, row, col]: wc[row, col] = sum_k S * wconv_flat[k],
    with col ordering matching torch Flatten of the NCHW conv output."""
    sel = np.zeros((C_OUT * KH * KW, IN_FEAT, FLAT), dtype=np.float32)
    for c in range(C_OUT):
        for oi in range(OH):
            for oj in range(OW):
                col = c * (OH * OW) + oi * OW + oj
                for di in range(KH):
                    for dj in range(KW):
                        row = (oi + di) * W + (oj + dj)
                        k = c * (KH * KW) + di * KW + dj
                        sel[k, row, col] = 1.0
    return sel


_SEL = _build_sel()  # (18, 25, 18), constant


def pack_params(params):
    """One-time parameter packing (jit-able): returns
       W_all: (416, 128) bf16   [wc(32 rows) | w1(128) | w2(128) | w3(128)]
       B_all: (4, 128) f32      [bc | b1 | b2 | b3]."""
    wconv, bconv, w1, b1, w2, b2, w3, b3 = params
    wc = jnp.tensordot(wconv.reshape(-1), jnp.asarray(_SEL), axes=1)      # (25, 18)
    wc_p = jnp.zeros((XPAD, LANE), jnp.float32).at[:IN_FEAT, :FLAT].set(wc)
    w1_p = jnp.zeros((LANE, LANE), jnp.float32).at[:FLAT, :H1].set(w1.T)
    w2_p = jnp.zeros((LANE, LANE), jnp.float32).at[:H1, :H2].set(w2.T)
    w3_p = jnp.zeros((LANE, LANE), jnp.float32).at[:H2, :H3].set(w3.T)
    W_all = jnp.concatenate([wc_p, w1_p, w2_p, w3_p], axis=0).astype(jnp.bfloat16)

    bc = jnp.repeat(bconv, OH * OW)                                       # (18,)
    B_all = jnp.stack([
        jnp.zeros((LANE,), jnp.float32).at[:FLAT].set(bc),
        jnp.zeros((LANE,), jnp.float32).at[:H1].set(b1),
        jnp.zeros((LANE,), jnp.float32).at[:H2].set(b2),
        jnp.zeros((LANE,), jnp.float32).at[:H3].set(b3),
    ], axis=0)                                                            # (4, 128)
    return W_all, B_all


def cnn_kernel(x_ref, w_ref, b_ref, o_ref):
    # x arrives straight from HBM as f32; cast on the VPU (slack unit).
    x = x_ref[...].astype(jnp.bfloat16)                  # (TB, 25)
    b = b_ref[...]                                       # (4, 128) f32

    wc = w_ref[0:IN_FEAT, :]                             # (25, 128)  bf16 (cols 18.. zero)
    w1 = w_ref[XPAD:XPAD + LANE, :]                      # (128, 128) bf16
    w2 = w_ref[XPAD + LANE:XPAD + 2 * LANE, :]           # (128, 128) bf16
    w3 = w_ref[XPAD + 2 * LANE:XPAD + 3 * LANE, :]       # (128, 128) bf16

    # conv lowered to a Toeplitz matmul (K = 25) + ReLU -> (TB, 128)
    h = jnp.dot(x, wc, preferred_element_type=jnp.float32)
    h = jnp.maximum(h + b[0:1, :], 0.0).astype(jnp.bfloat16)
    # fc1 + ReLU -> (TB, 128) (cols 64.. stay zero)
    h = jnp.dot(h, w1, preferred_element_type=jnp.float32)
    h = jnp.maximum(h + b[1:2, :], 0.0).astype(jnp.bfloat16)
    # fc2 + ReLU -> (TB, 128)
    h = jnp.dot(h, w2, preferred_element_type=jnp.float32)
    h = jnp.maximum(h + b[2:3, :], 0.0).astype(jnp.bfloat16)
    # fc3 -> only the first 25 lanes are meaningful; store exactly 25 (f32).
    out = jnp.dot(h, w3, preferred_element_type=jnp.float32)[:, :H3] + b[3:4, :H3]
    o_ref[...] = out.astype(o_ref.dtype)


def _pick_tb(n):
    # <=512 rows: single exact block (block dims equal array dims -> no ragged edge).
    if n <= 512:
        return n
    # >512: at least 2 grid steps so the "parallel" batch axis shards across both
    # v7x TensorCores; cap at 2048 so double-buffered in/out blocks + per-layer
    # f32 temporaries stay well inside v5e's 16 MiB scoped-VMEM default.
    return min(2048, _round_up((n + 1) // 2, 8))


@jax.jit
def cnn_forward_pallas(x, W_all, B_all):
    """x: (N, 1, 5, 5) float32 NCHW. Returns (N, 25) float32."""
    n = x.shape[0]
    tb = _pick_tb(n)
    grid = (pl.cdiv(n, tb),)

    x2 = x.reshape(n, IN_FEAT)        # contiguous reshape: metadata-only, no HBM pass

    flops_per_row = 2 * (IN_FEAT * LANE + 3 * LANE * LANE)
    bytes_accessed = (n * IN_FEAT * 4      # x read (f32)
                      + WROWS * LANE * 2   # packed weights (fetched once)
                      + 4 * LANE * 4       # biases
                      + n * H3 * 4)        # exact (n, 25) f32 output write

    out = pl.pallas_call(
        cnn_kernel,
        out_shape=jax.ShapeDtypeStruct((n, H3), jnp.float32),
        grid_spec=pltpu.PrefetchScalarGridSpec(
            num_scalar_prefetch=0,
            grid=grid,
            in_specs=[
                pl.BlockSpec((tb, IN_FEAT), lambda i: (i, 0)),     # x tile (last dim = full 25)
                pl.BlockSpec((WROWS, LANE), lambda i: (0, 0)),     # packed weights (resident)
                pl.BlockSpec((4, LANE), lambda i: (0, 0)),         # packed biases (resident)
            ],
            out_specs=pl.BlockSpec((tb, H3), lambda i: (i, 0)),    # exact output, no post-slice
        ),
        compiler_params=pltpu.CompilerParams(
            dimension_semantics=("parallel",)),
        cost_estimate=pl.CostEstimate(
            flops=n * flops_per_row,
            transcendentals=0,
            bytes_accessed=bytes_accessed),
    )(x2, W_all, B_all)

    return out


def cnn_forward_reference(x, params):
    wconv, bconv, w1, b1, w2, b2, w3, b3 = params
    y = jax.lax.conv_general_dilated(
        x, wconv, window_strides=(1, 1), padding="VALID",
        dimension_numbers=("NCHW", "OIHW", "NCHW"))
    y = jnp.maximum(y + bconv.reshape(1, -1, 1, 1), 0.0)
    y = y.reshape(x.shape[0], -1)
    y = jnp.maximum(y @ w1.T + b1, 0.0)
    y = jnp.maximum(y @ w2.T + b2, 0.0)
    return y @ w3.T + b3


def init_params(key):
    ks = jax.random.split(key, 8)
    def u(k, shape, fan_in):
        bound = 1.0 / np.sqrt(fan_in)
        return jax.random.uniform(k, shape, jnp.float32, -bound, bound)
    wconv = u(ks[0], (C_OUT, 1, KH, KW), KH * KW)     # Conv2d(1, 2, 3)
    bconv = u(ks[1], (C_OUT,), KH * KW)
    w1 = u(ks[2], (H1, FLAT), FLAT)                   # Linear(18, 64)  (torch (out,in))
    b1 = u(ks[3], (H1,), FLAT)
    w2 = u(ks[4], (H2, H1), H1)                       # Linear(64, 128)
    b2 = u(ks[5], (H2,), H1)
    w3 = u(ks[6], (H3, H2), H2)                       # Linear(128, 25)
    b3 = u(ks[7], (H3,), H2)
    return (wconv, bconv, w1, b1, w2, b2, w3, b3)


if __name__ == "__main__":
    key = jax.random.PRNGKey(0)
    k_x, k_p = jax.random.split(key)
    params = init_params(k_p)
    x = jax.random.normal(k_x, (2, 1, H, W), jnp.float32)   # NCHW, batch=2

    W_all, B_all = pack_params(params)                      # one-time packing

    out = cnn_forward_pallas(x, W_all, B_all)
    out = jax.block_until_ready(out)

    ref = cnn_forward_reference(x, params)
    # bf16 weights/activations with f32 accumulation -> loosened tolerance.
    np.testing.assert_allclose(np.asarray(out), np.asarray(ref), rtol=2e-2, atol=2e-2)

    print("KERNEL_OK")
</pallas_src>

<mosaic_0001>
module attributes {stable_mosaic.version = 11 : i64} {
  func.func @cnn_kernel(%arg0: i32, %arg1: memref<2x25xf32, #tpu.memory_space<vmem>>, %arg2: memref<416x128xbf16, #tpu.memory_space<vmem>>, %arg3: memref<4x128xf32, #tpu.memory_space<vmem>>, %arg4: memref<2x25xf32, #tpu.memory_space<vmem>>) attributes {dimension_semantics = [#tpu.dimension_semantics<parallel>], iteration_bounds = array<i64: 1>, scalar_prefetch = 0 : i64, scratch_operands = 0 : i64, tpu.core_type = #tpu.core_type<tc>, window_params = [{transform_indices = @transform_0, window_bounds = array<i64: 2, 25>}, {pipeline_mode = #tpu.pipeline_mode<synchronous>, transform_indices = @transform_1, window_bounds = array<i64: 416, 128>}, {pipeline_mode = #tpu.pipeline_mode<synchronous>, transform_indices = @transform_2, window_bounds = array<i64: 4, 128>}, {transform_indices = @transform_3, window_bounds = array<i64: 2, 25>}]} {
    %c0 = arith.constant 0 : index
    %c0_0 = arith.constant 0 : index
    %0 = vector.load %arg1[%c0, %c0_0] : memref<2x25xf32, #tpu.memory_space<vmem>>, vector<2x25xf32>
    %1 = arith.truncf %0 : vector<2x25xf32> to vector<2x25xbf16>
    %c0_1 = arith.constant 0 : index
    %c0_2 = arith.constant 0 : index
    %2 = vector.load %arg3[%c0_1, %c0_2] : memref<4x128xf32, #tpu.memory_space<vmem>>, vector<4x128xf32>
    %c0_3 = arith.constant 0 : index
    %c0_4 = arith.constant 0 : index
    %3 = vector.load %arg2[%c0_3, %c0_4] : memref<416x128xbf16, #tpu.memory_space<vmem>>, vector<25x128xbf16>
    %c32 = arith.constant 32 : index
    %c0_5 = arith.constant 0 : index
    %4 = vector.load %arg2[%c32, %c0_5] : memref<416x128xbf16, #tpu.memory_space<vmem>>, vector<128x128xbf16>
    %c160 = arith.constant 160 : index
    %c0_6 = arith.constant 0 : index
    %5 = vector.load %arg2[%c160, %c0_6] : memref<416x128xbf16, #tpu.memory_space<vmem>>, vector<128x128xbf16>
    %c288 = arith.constant 288 : index
    %c0_7 = arith.constant 0 : index
    %6 = vector.load %arg2[%c288, %c0_7] : memref<416x128xbf16, #tpu.memory_space<vmem>>, vector<128x128xbf16>
    %cst = arith.constant dense<0.000000e+00> : vector<2x128xf32>
    %7 = tpu.matmul %1, %3, %cst {dimension_numbers = #tpu.dot_dimension_numbers<[1], [0], [0], [1], [0, 0, 1, 1], [], []>} : vector<2x25xbf16>, vector<25x128xbf16>, vector<2x128xf32> -> vector<2x128xf32>
    %8 = vector.extract_strided_slice %2 {offsets = [0, 0], sizes = [1, 128], strides = [1, 1]} : vector<4x128xf32> to vector<1x128xf32>
    %9 = vector.broadcast %8 : vector<1x128xf32> to vector<2x128xf32>
    %10 = arith.addf %7, %9 : vector<2x128xf32>
    %cst_8 = arith.constant 0.000000e+00 : f32
    %11 = vector.broadcast %cst_8 : f32 to vector<2x128xf32>
    %12 = arith.maximumf %10, %11 : vector<2x128xf32>
    %13 = arith.truncf %12 : vector<2x128xf32> to vector<2x128xbf16>
    %cst_9 = arith.constant dense<0.000000e+00> : vector<2x128xf32>
    %14 = tpu.matmul %13, %4, %cst_9 {dimension_numbers = #tpu.dot_dimension_numbers<[1], [0], [0], [1], [0, 0, 1, 1], [], []>} : vector<2x128xbf16>, vector<128x128xbf16>, vector<2x128xf32> -> vector<2x128xf32>
    %15 = vector.extract_strided_slice %2 {offsets = [1, 0], sizes = [1, 128], strides = [1, 1]} : vector<4x128xf32> to vector<1x128xf32>
    %16 = vector.broadcast %15 : vector<1x128xf32> to vector<2x128xf32>
    %17 = arith.addf %14, %16 : vector<2x128xf32>
    %cst_10 = arith.constant 0.000000e+00 : f32
    %18 = vector.broadcast %cst_10 : f32 to vector<2x128xf32>
    %19 = arith.maximumf %17, %18 : vector<2x128xf32>
    %20 = arith.truncf %19 : vector<2x128xf32> to vector<2x128xbf16>
    %cst_11 = arith.constant dense<0.000000e+00> : vector<2x128xf32>
    %21 = tpu.matmul %20, %5, %cst_11 {dimension_numbers = #tpu.dot_dimension_numbers<[1], [0], [0], [1], [0, 0, 1, 1], [], []>} : vector<2x128xbf16>, vector<128x128xbf16>, vector<2x128xf32> -> vector<2x128xf32>
    %22 = vector.extract_strided_slice %2 {offsets = [2, 0], sizes = [1, 128], strides = [1, 1]} : vector<4x128xf32> to vector<1x128xf32>
    %23 = vector.broadcast %22 : vector<1x128xf32> to vector<2x128xf32>
    %24 = arith.addf %21, %23 : vector<2x128xf32>
    %cst_12 = arith.constant 0.000000e+00 : f32
    %25 = vector.broadcast %cst_12 : f32 to vector<2x128xf32>
    %26 = arith.maximumf %24, %25 : vector<2x128xf32>
    %27 = arith.truncf %26 : vector<2x128xf32> to vector<2x128xbf16>
    %cst_13 = arith.constant dense<0.000000e+00> : vector<2x128xf32>
    %28 = tpu.matmul %27, %6, %cst_13 {dimension_numbers = #tpu.dot_dimension_numbers<[1], [0], [0], [1], [0, 0, 1, 1], [], []>} : vector<2x128xbf16>, vector<128x128xbf16>, vector<2x128xf32> -> vector<2x128xf32>
    %29 = vector.extract_strided_slice %28 {offsets = [0, 0], sizes = [2, 25], strides = [1, 1]} : vector<2x128xf32> to vector<2x25xf32>
    %30 = vector.extract_strided_slice %2 {offsets = [3, 0], sizes = [1, 25], strides = [1, 1]} : vector<4x128xf32> to vector<1x25xf32>
    %31 = vector.broadcast %30 : vector<1x25xf32> to vector<2x25xf32>
    %32 = arith.addf %29, %31 : vector<2x25xf32>
    %c0_14 = arith.constant 0 : index
    %c0_15 = arith.constant 0 : index
    %33 = vector.load %arg4[%c0_14, %c0_15] : memref<2x25xf32, #tpu.memory_space<vmem>>, vector<2x25xf32>
    tpu.vector_store %arg4[%c0_14, %c0_15], %32 {strides = array<i32>} : memref<2x25xf32, #tpu.memory_space<vmem>>, vector<2x25xf32>,
    return
  }
  func.func @transform_0(%arg0: i32) -> (i32, i32) {
    %c0_i32 = arith.constant 0 : i32
    %c0_i32_0 = arith.constant 0 : i32
    return %arg0, %c0_i32 : i32, i32
  }
  func.func @transform_1(%arg0: i32) -> (i32, i32) {
    %c0_i32 = arith.constant 0 : i32
    %c0_i32_0 = arith.constant 0 : i32
    %c0_i32_1 = arith.constant 0 : i32
    return %c0_i32, %c0_i32_0 : i32, i32
  }
  func.func @transform_2(%arg0: i32) -> (i32, i32) {
    %c0_i32 = arith.constant 0 : i32
    %c0_i32_0 = arith.constant 0 : i32
    %c0_i32_1 = arith.constant 0 : i32
    return %c0_i32, %c0_i32_0 : i32, i32
  }
  func.func @transform_3(%arg0: i32) -> (i32, i32) {
    %c0_i32 = arith.constant 0 : i32
    %c0_i32_0 = arith.constant 0 : i32
    return %arg0, %c0_i32 : i32, i32
  }
}

</mosaic_0001>

<llo_original>
// kernel: cnn_forward_pallas.1
$region0: #{cnn_forward_pallas.1}
  #allocation0 [shape = 'u32[]', space=smem, size = 0x4, offset = 0x4, fixed_abs, tag = 'smem constant byte address 0x4 - core index']
  #allocation1 [shape = 'u32[144,128]{1,0:T(1,128)}', space=vmem, size = 0x12000, scoped, tag = 'internal scratch']
  %s0 = inlined_call_operand.vmem [shape: f32[2,25], index: 0, kind: input, shape index: {}]
  %s1 = inlined_call_operand.hbm [shape: bf16[416,128], index: 1, kind: input, shape index: {}]
  %s2 = inlined_call_operand.vmem [shape: f32[4,128], index: 2, kind: input, shape index: {}]
  %s3 = inlined_call_operand.hbm [shape: f32[2,25], index: 3, kind: output, shape index: {}]
  %s4 = sld [smem:[#allocation0]]
  $region26: #{cnn_forward_pallas.1} parent=0
    _
  %s6 = ssub.s32 1, %s4
  %s7 = scalar_select 0, %s6, %s4
  $region1: #{cnn_forward_pallas.1} parent=0
    #allocation2 [shape = 'u8[106496]{0}', space=vmem, size = 0x1a000, scoped, tag = 'input window, operand 1, single buffered']
    #allocation3 [shape = 's32[1]{0}', space=sflag, size = 0x4, scoped, tag = 'scoped memory for cnn_forward_pallas.1']
    #allocation4 [shape = 's32[1]{0}', space=sflag, size = 0x4, scoped, tag = 'scoped memory for cnn_forward_pallas.1']
    #allocation5 [shape = 'u8[1024]{0}', space=vmem, size = 0x400, scoped, tag = 'output window, operand 0, single buffered']
    %8 = vsyncpa [#allocation3], 0
    %9 = vsyncpa [#allocation4], 0
    // Predicated region
    $region2: #{cnn_forward_pallas.1} parent=1 // pred_check
      _
    $region3: #{cnn_forward_pallas.1} parent=1 // pred_check_branch
      %11 = sbr.rel (0) target = $region5
    $region4: #{cnn_forward_pallas.1} parent=1 // pred_region
      _
    $region5: #{cnn_forward_pallas.1} parent=1 // pred_fallthru
      _
    // Predicated region
    $region6: #{cnn_forward_pallas.1} parent=1 // pred_check
      _
    $region7: #{cnn_forward_pallas.1} parent=1 // pred_check_branch
      %13 = sbr.rel (0) target = $region9
    $region8: #{cnn_forward_pallas.1} parent=1 // pred_region
      %s15 = ssub.s32 3328, 3328
      %16 = vsyncadd [#allocation3], %s15
      %s17 = sshll.u32 [#allocation2], 4
      %s18 = int_to_ptr.vmem [resolvable:$true] %s17
      %23 = dma.hbm_to_vmem [thread:$0]  %s1, 3328, %s18, [#allocation3], 64, 64, 4
    $region9: #{cnn_forward_pallas.1} parent=1 // pred_fallthru
      _
    // Predicated region
    $region10: #{cnn_forward_pallas.1} parent=1 // pred_check
      _
    $region11: #{cnn_forward_pallas.1} parent=1 // pred_check_branch
      %25 = sbr.rel (0) target = $region13
    $region12: #{cnn_forward_pallas.1} parent=1 // pred_region
      _
    $region13: #{cnn_forward_pallas.1} parent=1 // pred_fallthru
      _
    // Predicated region
    $region14: #{cnn_forward_pallas.1} parent=1 // pred_check
      _
    $region15: #{cnn_forward_pallas.1} parent=1 // pred_check_branch
      %27 = sbr.rel (0) target = $region17
    $region16: #{cnn_forward_pallas.1} parent=1 // pred_region
      %28 = dma.done [#allocation3], 3328
    $region17: #{cnn_forward_pallas.1} parent=1 // pred_fallthru
      _
    %v30 = vld [vmem:[%s0] sm:$0x3]
    %v31 = vpack.c.bf16 %v30, %v30
    %v32 = vld [vmem:[%s2] sm:$0xf]
    %v33 = vld [vmem:[#allocation2] sm:$0xf]
    %v34 = vld [vmem:[#allocation2 + $0x4] sm:$0xf]
    %v35 = vld [vmem:[#allocation2 + $0x8] sm:$0xf]
    %v36 = vld [vmem:[#allocation2 + $0xc] sm:$0x1]
    %v37 = vld [vmem:[#allocation2 + $0x10] sm:$0xf]
    %v38 = vld [vmem:[#allocation2 + $0x14] sm:$0xf]
    %v39 = vld [vmem:[#allocation2 + $0x18] sm:$0xf]
    %v40 = vld [vmem:[#allocation2 + $0x1c] sm:$0xf]
    %v41 = vld [vmem:[#allocation2 + $0x20] sm:$0xf]
    %v42 = vld [vmem:[#allocation2 + $0x24] sm:$0xf]
    %v43 = vld [vmem:[#allocation2 + $0x28] sm:$0xf]
    %v44 = vld [vmem:[#allocation2 + $0x2c] sm:$0xf]
    %v45 = vld [vmem:[#allocation2 + $0x30] sm:$0xf]
    %v46 = vld [vmem:[#allocation2 + $0x34] sm:$0xf]
    %v47 = vld [vmem:[#allocation2 + $0x38] sm:$0xf]
    %v48 = vld [vmem:[#allocation2 + $0x3c] sm:$0xf]
    %v49 = vld [vmem:[#allocation2 + $0x40] sm:$0xf]
    %v50 = vld [vmem:[#allocation2 + $0x44] sm:$0xf]
    %v51 = vld [vmem:[#allocation2 + $0x48] sm:$0xf]
    %v52 = vld [vmem:[#allocation2 + $0x4c] sm:$0xf]
    %v53 = vld [vmem:[#allocation2 + $0x50] sm:$0xf]
    %v54 = vld [vmem:[#allocation2 + $0x54] sm:$0xf]
    %v55 = vld [vmem:[#allocation2 + $0x58] sm:$0xf]
    %v56 = vld [vmem:[#allocation2 + $0x5c] sm:$0xf]
    %v57 = vld [vmem:[#allocation2 + $0x60] sm:$0xf]
    %v58 = vld [vmem:[#allocation2 + $0x64] sm:$0xf]
    %v59 = vld [vmem:[#allocation2 + $0x68] sm:$0xf]
    %v60 = vld [vmem:[#allocation2 + $0x6c] sm:$0xf]
    %v61 = vld [vmem:[#allocation2 + $0x70] sm:$0xf]
    %v62 = vld [vmem:[#allocation2 + $0x74] sm:$0xf]
    %v63 = vld [vmem:[#allocation2 + $0x78] sm:$0xf]
    %v64 = vld [vmem:[#allocation2 + $0x7c] sm:$0xf]
    %v65 = vld [vmem:[#allocation2 + $0x80] sm:$0xf]
    %v66 = vld [vmem:[#allocation2 + $0x84] sm:$0xf]
    %v67 = vld [vmem:[#allocation2 + $0x88] sm:$0xf]
    %v68 = vld [vmem:[#allocation2 + $0x8c] sm:$0xf]
    %v69 = vld [vmem:[#allocation2 + $0x90] sm:$0xf]
    %v70 = vld [vmem:[#allocation2 + $0x94] sm:$0xf]
    %v71 = vld [vmem:[#allocation2 + $0x98] sm:$0xf]
    %v72 = vld [vmem:[#allocation2 + $0x9c] sm:$0xf]
    %v73 = vld [vmem:[#allocation2 + $0xa0] sm:$0xf]
    %v74 = vld [vmem:[#allocation2 + $0xa4] sm:$0xf]
    %v75 = vld [vmem:[#allocation2 + $0xa8] sm:$0xf]
    %v76 = vld [vmem:[#allocation2 + $0xac] sm:$0xf]
    %v77 = vld [vmem:[#allocation2 + $0xb0] sm:$0xf]
    %v78 = vld [vmem:[#allocation2 + $0xb4] sm:$0xf]
    %v79 = vld [vmem:[#allocation2 + $0xb8] sm:$0xf]
    %v80 = vld [vmem:[#allocation2 + $0xbc] sm:$0xf]
    %v81 = vld [vmem:[#allocation2 + $0xc0] sm:$0xf]
    %v82 = vld [vmem:[#allocation2 + $0xc4] sm:$0xf]
    %v83 = vld [vmem:[#allocation2 + $0xc8] sm:$0xf]
    %v84 = vld [vmem:[#allocation2 + $0xcc] sm:$0xf]
    %v85 = vlaneseq
    %v86 = vshrl.u32 %v85, 7
    %v87 = vsub.s32 0, %v86
    %v88 = vrot.slane %v32, %v87
    %v93 = vunpack.c.l.b16 %v33
    %v94 = vunpack.c.l.b16 %v34
    %v95 = vunpack.c.l.b16 %v35
    %v96 = vunpack.c.l.b16 %v36
    %v97 = vpack.c.b16 %v94, %v93
    %v98 = vpack.c.b16 %v96, %v95
    %vm100 = vcmask 203776
    %v102 = vsel %vm100, %v31, 0
    %vm104 = vcmask 1043456
    %vm105 = vcmask 1044480
    %v106 = vsel %vm104, 4294967295, 65535
    %v107 = vsel %vm105, %v106, 0
    %v109 = vand.u32 %v98, %v107
    %111 = vmatprep.subr.bf16.mxu0 0
    %112 = vmatpush1.bf16.msra.mxu0 %v97
    %113 = vmatprep.subr.bf16.mxu0 0
    %114 = vmatpush1.bf16.msra.mxu0 %v109
    %115 = vmatprep.subr.bf16.mxu0 0
    %116 = vmatpush1.bf16.msra.mxu0 0
    %117 = vmatprep.subr.bf16.mxu0 0
    %118 = vmatpush1.bf16.msra.mxu0 0
    %119 = vmatprep.subr.bf16.mxu0 0
    %120 = vmatpush1.bf16.msra.mxu0 0
    %121 = vmatprep.subr.bf16.mxu0 0
    %122 = vmatpush1.bf16.msra.mxu0 0
    %123 = vmatprep.subr.bf16.mxu0 0
    %124 = vmatpush1.bf16.msra.mxu0 0
    %125 = vmatprep.subr.bf16.mxu0 0
    %126 = vmatpush1.bf16.msra.mxu0 0
    %127 = vmatprep.subr.bf16.mxu0 0
    %128 = vmatpush1.bf16.msra.mxu0 0
    %129 = vmatprep.subr.bf16.mxu0 0
    %130 = vmatpush1.bf16.msra.mxu0 0
    %131 = vmatprep.subr.bf16.mxu0 0
    %132 = vmatpush1.bf16.msra.mxu0 0
    %133 = vmatprep.subr.bf16.mxu0 0
    %134 = vmatpush1.bf16.msra.mxu0 0
    %135 = vmatprep.subr.bf16.mxu0 0
    %136 = vmatpush1.bf16.msra.mxu0 0
    %137 = vmatprep.subr.bf16.mxu0 0
    %138 = vmatpush1.bf16.msra.mxu0 0
    %139 = vmatprep.subr.bf16.mxu0 0
    %140 = vmatpush1.bf16.msra.mxu0 0
    %141 = vmatprep.subr.bf16.mxu0 0
    %142 = vmatpush1.bf16.msra.mxu0 0
    %143 = vmatprep.mubr.bf16.mxu0 0
    %144 = vmatmul.mubr.bf16.gmra.mrb[0].mxu0 %v102
    %v145 = vpop.f32.mrb[0].mxu0
    %v146 = vadd.f32 %v88, %v145
    %v147 = vpop.f32.mrb[0].mxu0
    %v148 = vpop.f32.mrb[0].mxu0
    %v149 = vpop.f32.mrb[0].mxu0
    %150 = vdwg.mxu0
    %v151 = vmax.f32 %v146, 0.0
    %v152 = vpack.c.bf16 %v151, %v151
    %v153 = vlaneseq
    %v154 = vshrl.u32 %v153, 7
    %v155 = vsub.s32 1, %v154
    %v156 = vrot.slane %v32, %v155
    %v173 = vunpack.c.l.b16 %v37
    %v174 = vunpack.c.l.b16 %v38
    %v175 = vunpack.c.l.b16 %v39
    %v176 = vunpack.c.l.b16 %v40
    %v177 = vunpack.c.l.b16 %v41
    %v178 = vunpack.c.l.b16 %v42
    %v179 = vunpack.c.l.b16 %v43
    %v180 = vunpack.c.l.b16 %v44
    %v181 = vunpack.c.l.b16 %v45
    %v182 = vunpack.c.l.b16 %v46
    %v183 = vunpack.c.l.b16 %v47
    %v184 = vunpack.c.l.b16 %v48
    %v185 = vunpack.c.l.b16 %v49
    %v186 = vunpack.c.l.b16 %v50
    %v187 = vunpack.c.l.b16 %v51
    %v188 = vunpack.c.l.b16 %v52
    %v189 = vpack.c.b16 %v174, %v173
    %v190 = vpack.c.b16 %v176, %v175
    %v191 = vpack.c.b16 %v178, %v177
    %v192 = vpack.c.b16 %v180, %v179
    %v193 = vpack.c.b16 %v182, %v181
    %v194 = vpack.c.b16 %v184, %v183
    %v195 = vpack.c.b16 %v186, %v185
    %v196 = vpack.c.b16 %v188, %v187
    %205 = vmatprep.subr.bf16.mxu0 0
    %206 = vmatpush1.bf16.msra.mxu0 %v189
    %207 = vmatprep.subr.bf16.mxu0 0
    %208 = vmatpush1.bf16.msra.mxu0 %v190
    %209 = vmatprep.subr.bf16.mxu0 0
    %210 = vmatpush1.bf16.msra.mxu0 %v191
    %211 = vmatprep.subr.bf16.mxu0 0
    %212 = vmatpush1.bf16.msra.mxu0 %v192
    %213 = vmatprep.subr.bf16.mxu0 0
    %214 = vmatpush1.bf16.msra.mxu0 %v193
    %215 = vmatprep.subr.bf16.mxu0 0
    %216 = vmatpush1.bf16.msra.mxu0 %v194
    %217 = vmatprep.subr.bf16.mxu0 0
    %218 = vmatpush1.bf16.msra.mxu0 %v195
    %219 = vmatprep.subr.bf16.mxu0 0
    %220 = vmatpush1.bf16.msra.mxu0 %v196
    %221 = vmatprep.subr.bf16.mxu0 0
    %222 = vmatpush1.bf16.msra.mxu0 0
    %223 = vmatprep.subr.bf16.mxu0 0
    %224 = vmatpush1.bf16.msra.mxu0 0
    %225 = vmatprep.subr.bf16.mxu0 0
    %226 = vmatpush1.bf16.msra.mxu0 0
    %227 = vmatprep.subr.bf16.mxu0 0
    %228 = vmatpush1.bf16.msra.mxu0 0
    %229 = vmatprep.subr.bf16.mxu0 0
    %230 = vmatpush1.bf16.msra.mxu0 0
    %231 = vmatprep.subr.bf16.mxu0 0
    %232 = vmatpush1.bf16.msra.mxu0 0
    %233 = vmatprep.subr.bf16.mxu0 0
    %234 = vmatpush1.bf16.msra.mxu0 0
    %235 = vmatprep.subr.bf16.mxu0 0
    %236 = vmatpush1.bf16.msra.mxu0 0
    %237 = vmatprep.mubr.bf16.mxu0 0
    %238 = vmatmul.mubr.bf16.gmra.mrb[0].mxu0 %v152
    %v239 = vpop.f32.mrb[0].mxu0
    %v240 = vadd.f32 %v156, %v239
    %v241 = vpop.f32.mrb[0].mxu0
    %v242 = vpop.f32.mrb[0].mxu0
    %v243 = vpop.f32.mrb[0].mxu0
    %244 = vdwg.mxu0
    %v245 = vmax.f32 %v240, 0.0
    %v246 = vpack.c.bf16 %v245, %v245
    %v247 = vlaneseq
    %v248 = vshrl.u32 %v247, 7
    %v249 = vsub.s32 2, %v248
    %v250 = vrot.slane %v32, %v249
    %v267 = vunpack.c.l.b16 %v53
    %v268 = vunpack.c.l.b16 %v54
    %v269 = vunpack.c.l.b16 %v55
    %v270 = vunpack.c.l.b16 %v56
    %v271 = vunpack.c.l.b16 %v57
    %v272 = vunpack.c.l.b16 %v58
    %v273 = vunpack.c.l.b16 %v59
    %v274 = vunpack.c.l.b16 %v60
    %v275 = vunpack.c.l.b16 %v61
    %v276 = vunpack.c.l.b16 %v62
    %v277 = vunpack.c.l.b16 %v63
    %v278 = vunpack.c.l.b16 %v64
    %v279 = vunpack.c.l.b16 %v65
    %v280 = vunpack.c.l.b16 %v66
    %v281 = vunpack.c.l.b16 %v67
    %v282 = vunpack.c.l.b16 %v68
    %v283 = vpack.c.b16 %v268, %v267
    %v284 = vpack.c.b16 %v270, %v269
    %v285 = vpack.c.b16 %v272, %v271
    %v286 = vpack.c.b16 %v274, %v273
    %v287 = vpack.c.b16 %v276, %v275
    %v288 = vpack.c.b16 %v278, %v277
    %v289 = vpack.c.b16 %v280, %v279
    %v290 = vpack.c.b16 %v282, %v281
    %299 = vmatprep.subr.bf16.mxu0 0
    %300 = vmatpush1.bf16.msra.mxu0 %v283
    %301 = vmatprep.subr.bf16.mxu0 0
    %302 = vmatpush1.bf16.msra.mxu0 %v284
    %303 = vmatprep.subr.bf16.mxu0 0
    %304 = vmatpush1.bf16.msra.mxu0 %v285
    %305 = vmatprep.subr.bf16.mxu0 0
    %306 = vmatpush1.bf16.msra.mxu0 %v286
    %307 = vmatprep.subr.bf16.mxu0 0
    %308 = vmatpush1.bf16.msra.mxu0 %v287
    %309 = vmatprep.subr.bf16.mxu0 0
    %310 = vmatpush1.bf16.msra.mxu0 %v288
    %311 = vmatprep.subr.bf16.mxu0 0
    %312 = vmatpush1.bf16.msra.mxu0 %v289
    %313 = vmatprep.subr.bf16.mxu0 0
    %314 = vmatpush1.bf16.msra.mxu0 %v290
    %315 = vmatprep.subr.bf16.mxu0 0
    %316 = vmatpush1.bf16.msra.mxu0 0
    %317 = vmatprep.subr.bf16.mxu0 0
    %318 = vmatpush1.bf16.msra.mxu0 0
    %319 = vmatprep.subr.bf16.mxu0 0
    %320 = vmatpush1.bf16.msra.mxu0 0
    %321 = vmatprep.subr.bf16.mxu0 0
    %322 = vmatpush1.bf16.msra.mxu0 0
    %323 = vmatprep.subr.bf16.mxu0 0
    %324 = vmatpush1.bf16.msra.mxu0 0
    %325 = vmatprep.subr.bf16.mxu0 0
    %326 = vmatpush1.bf16.msra.mxu0 0
    %327 = vmatprep.subr.bf16.mxu0 0
    %328 = vmatpush1.bf16.msra.mxu0 0
    %329 = vmatprep.subr.bf16.mxu0 0
    %330 = vmatpush1.bf16.msra.mxu0 0
    %331 = vmatprep.mubr.bf16.mxu0 0
    %332 = vmatmul.mubr.bf16.gmra.mrb[0].mxu0 %v246
    %v333 = vpop.f32.mrb[0].mxu0
    %v334 = vadd.f32 %v250, %v333
    %v335 = vpop.f32.mrb[0].mxu0
    %v336 = vpop.f32.mrb[0].mxu0
    %v337 = vpop.f32.mrb[0].mxu0
    %338 = vdwg.mxu0
    %v339 = vmax.f32 %v334, 0.0
    %v340 = vpack.c.bf16 %v339, %v339
    %v357 = vunpack.c.l.b16 %v69
    %v358 = vunpack.c.l.b16 %v70
    %v359 = vunpack.c.l.b16 %v71
    %v360 = vunpack.c.l.b16 %v72
    %v361 = vunpack.c.l.b16 %v73
    %v362 = vunpack.c.l.b16 %v74
    %v363 = vunpack.c.l.b16 %v75
    %v364 = vunpack.c.l.b16 %v76
    %v365 = vunpack.c.l.b16 %v77
    %v366 = vunpack.c.l.b16 %v78
    %v367 = vunpack.c.l.b16 %v79
    %v368 = vunpack.c.l.b16 %v80
    %v369 = vunpack.c.l.b16 %v81
    %v370 = vunpack.c.l.b16 %v82
    %v371 = vunpack.c.l.b16 %v83
    %v372 = vunpack.c.l.b16 %v84
    %v373 = vpack.c.b16 %v358, %v357
    %v374 = vpack.c.b16 %v360, %v359
    %v375 = vpack.c.b16 %v362, %v361
    %v376 = vpack.c.b16 %v364, %v363
    %v377 = vpack.c.b16 %v366, %v365
    %v378 = vpack.c.b16 %v368, %v367
    %v379 = vpack.c.b16 %v370, %v369
    %v380 = vpack.c.b16 %v372, %v371
    %389 = vmatprep.subr.bf16.mxu0 0
    %390 = vmatpush1.bf16.msra.mxu0 %v373
    %391 = vmatprep.subr.bf16.mxu0 0
    %392 = vmatpush1.bf16.msra.mxu0 %v374
    %393 = vmatprep.subr.bf16.mxu0 0
    %394 = vmatpush1.bf16.msra.mxu0 %v375
    %395 = vmatprep.subr.bf16.mxu0 0
    %396 = vmatpush1.bf16.msra.mxu0 %v376
    %397 = vmatprep.subr.bf16.mxu0 0
    %398 = vmatpush1.bf16.msra.mxu0 %v377
    %399 = vmatprep.subr.bf16.mxu0 0
    %400 = vmatpush1.bf16.msra.mxu0 %v378
    %401 = vmatprep.subr.bf16.mxu0 0
    %402 = vmatpush1.bf16.msra.mxu0 %v379
    %403 = vmatprep.subr.bf16.mxu0 0
    %404 = vmatpush1.bf16.msra.mxu0 %v380
    %405 = vmatprep.subr.bf16.mxu0 0
    %406 = vmatpush1.bf16.msra.mxu0 0
    %407 = vmatprep.subr.bf16.mxu0 0
    %408 = vmatpush1.bf16.msra.mxu0 0
    %409 = vmatprep.subr.bf16.mxu0 0
    %410 = vmatpush1.bf16.msra.mxu0 0
    %411 = vmatprep.subr.bf16.mxu0 0
    %412 = vmatpush1.bf16.msra.mxu0 0
    %413 = vmatprep.subr.bf16.mxu0 0
    %414 = vmatpush1.bf16.msra.mxu0 0
    %415 = vmatprep.subr.bf16.mxu0 0
    %416 = vmatpush1.bf16.msra.mxu0 0
    %417 = vmatprep.subr.bf16.mxu0 0
    %418 = vmatpush1.bf16.msra.mxu0 0
    %419 = vmatprep.subr.bf16.mxu0 0
    %420 = vmatpush1.bf16.msra.mxu0 0
    %421 = vmatprep.mubr.bf16.mxu0 0
    %422 = vmatmul.mubr.bf16.gmra.mrb[0].mxu0 %v340
    %v423 = vpop.f32.mrb[0].mxu0
    %v424 = vadd.f32 0.0, %v423
    %v425 = vpop.f32.mrb[0].mxu0
    %v426 = vpop.f32.mrb[0].mxu0
    %v427 = vpop.f32.mrb[0].mxu0
    %428 = vdwg.mxu0
    %v429 = vlaneseq
    %v430 = vshrl.u32 %v429, 7
    %v431 = vsub.s32 3, %v430
    %v432 = vrot.slane %v32, %v431
    %v433 = vadd.f32 %v424, %v432
    %vm434 = vcmask 197632
    %435 = vst.msk [vmem:[#allocation5] sm:$0x3] %vm434, %v433
    // Predicated region
    $region18: #{cnn_forward_pallas.1} parent=1 // pred_check
      _
    $region19: #{cnn_forward_pallas.1} parent=1 // pred_check_branch
      %437 = sbr.rel (0) target = $region21
    $region20: #{cnn_forward_pallas.1} parent=1 // pred_region
      %s439 = ssub.s32 32, 32
      %440 = vsyncadd [#allocation4], %s439
      %s442 = sshll.u32 [#allocation5], 4
      %s443 = int_to_ptr.vmem [resolvable:$true] %s442
      %445 = dma.vmem_to_hbm [thread:$0]  %s443, 32, %s3, [#allocation4]
    $region21: #{cnn_forward_pallas.1} parent=1 // pred_fallthru
      _
    // Predicated region
    $region22: #{cnn_forward_pallas.1} parent=1 // pred_check
      _
    $region23: #{cnn_forward_pallas.1} parent=1 // pred_check_branch
      %447 = sbr.rel (0) target = $region25
    $region24: #{cnn_forward_pallas.1} parent=1 // pred_region
      %448 = dma.done [#allocation4], 32
    $region25: #{cnn_forward_pallas.1} parent=1 // pred_fallthru
      _
    %449 = vsyncpa [#allocation3], 1
    %450 = vsyncpa [#allocation4], 1

</llo_original>
